<compile_context>
chip_gen: v7x
topology: tpu7x:2x2x1
jax: 0.10.0
libtpu: 0.0.40
codegen_flags: <defaults>
</compile_context>

<pallas_src>
import functools

import jax
import jax.numpy as jnp
from jax.experimental import pallas as pl
from jax.experimental.pallas import tpu as pltpu

GEM_EPS = 1e-6


def _choose_feature_tile(f):
    """Feature-block (sublane) tile. Small F -> single block; big F -> 128/256/512."""
    if f <= 512:
        return f
    for t in (512, 256, 128):
        if f % t == 0:
            return t
    return 256  # F gets zero-padded up to a multiple of 256


def _choose_spatial_tile(hw, tile_f, vmem_budget_bytes=20 << 20):
    """Spatial (lane) tile width, sized against a VMEM budget.

    Budgets ~4 concurrent (tile_f, tile_hw) f32 temps (feats + clamp/pow
    chain) per grid step; bigger tiles amortize the ~0.35us/step pipeline
    overhead, so we take the largest tile the budget allows.
    """
    per_col_bytes = 4 * tile_f * 4
    cap = max(128, (vmem_budget_bytes // per_col_bytes) // 128 * 128)
    if hw <= cap:
        return hw                      # single full-extent block (always layout-legal)
    t = cap
    while t >= 128:                    # prefer an exact divisor: no masked tail tile
        if hw % t == 0:
            return t
        t -= 128
    return cap                         # padded + masked last tile


def isic_kernel(x_ref, wct_ref, bc_ref, p_ref, wl_ref, out_ref, acc_ref,
                *, hw_total, tile_hw, needs_mask):
    # x_ref  : (C, THW)     one image's channels x one spatial tile (HW on lanes)
    # wct_ref: (TF, C)      synthetic backbone 1x1-conv weight (this F block)
    # bc_ref : (TF, 1)      synthetic backbone bias (column)
    # p_ref  : (1, 1) SMEM  GeM learnable exponent p
    # wl_ref : (TF, 1)      classifier Linear weight rows for this F block
    # out_ref: (1, 1)       partial logit for this (image, F block)
    # acc_ref: (TF, 1) VMEM running GeM power-sum over spatial tiles
    s = pl.program_id(2)

    @pl.when(s == 0)
    def _init():
        acc_ref[...] = jnp.zeros_like(acc_ref)

    x = x_ref[...].astype(jnp.float32)           # (C, THW)
    wct = wct_ref[...].astype(jnp.float32)       # (TF, C)
    c_in = x_ref.shape[0]

    # ---- synthetic backbone: 1x1 conv as C VPU multiply-adds ----
    # K = C (3..4) is far too small for the MXU; keep F on sublanes, HW on lanes.
    # (A stride-0 pre-broadcast load of x rows is a possible micro-opt; XLU has
    #  slack so the jnp broadcast is kept for simplicity.)
    feats = wct[:, 0:1] * x[0:1, :]              # (TF, 1) * (1, THW) -> (TF, THW)
    for c in range(1, c_in):
        feats = feats + wct[:, c:c + 1] * x[c:c + 1, :]
    feats = feats + bc_ref[...].astype(jnp.float32)

    # ---- GeM partial sum: sum_hw clamp(x, eps)^p ----
    # The backbone ReLU is subsumed by this clamp (eps > 0).
    p = p_ref[0, 0]
    clamped = jnp.maximum(feats, GEM_EPS)
    powed = jnp.exp(p * jnp.log(clamped))        # runtime exponent -> EUP log/exp
    if needs_mask:
        # Padded tail tile: zero out lanes past the true spatial extent.
        cols = jax.lax.broadcasted_iota(jnp.int32, powed.shape, 1)
        powed = jnp.where(cols < (hw_total - s * tile_hw), powed, 0.0)
    acc_ref[...] += jnp.sum(powed, axis=1, keepdims=True)   # (TF, 1)

    # ---- finalize this F block on the last spatial tile ----
    @pl.when(s == pl.num_programs(2) - 1)
    def _finalize():
        pooled = acc_ref[...] * (1.0 / float(hw_total))     # mean over TRUE H*W
        pooled = jnp.exp(jnp.log(pooled) / p)               # ^(1/p); pooled > 0
        wl = wl_ref[...].astype(jnp.float32)                # (TF, 1)
        # Partial Linear(F -> 1): VPU multiply + sublane reduction (no N=1 matmul).
        out_ref[...] = jnp.sum(pooled * wl, axis=0, keepdims=True)


def isic_forward(images, params, *, tile_hw=None, tile_f=None,
                 vmem_budget_bytes=20 << 20):
    """images: (B, C, H, W) NCHW (PyTorch convention), f32 or bf16."""
    B, C, H, W = images.shape
    HW = H * W
    wcT, bc, wl = params["wcT"], params["bc"], params["wl"]
    F = wcT.shape[0]
    assert wl.shape[1] == 1, "kernel head assumes num_classes == 1"

    # ---- feature-block tiling (parallel grid axis; pads F with zero rows) ----
    if tile_f is None:
        tile_f = _choose_feature_tile(F)
    if F % tile_f != 0:
        pad = tile_f - F % tile_f
        wcT = jnp.pad(wcT, ((0, pad), (0, 0)))
        bc = jnp.pad(bc, ((0, pad), (0, 0)))
        wl = jnp.pad(wl, ((0, pad), (0, 0)))   # padded rows contribute 0 to the logit
    n_f = wcT.shape[0] // tile_f

    # ---- spatial tiling (reduction axis, last in the grid) ----
    if tile_hw is None:
        tile_hw = _choose_spatial_tile(HW, tile_f, vmem_budget_bytes)
    tile_hw = min(tile_hw, HW)
    n_s = pl.cdiv(HW, tile_hw)
    needs_mask = (HW % tile_hw) != 0

    # Free reshape -- keeps PyTorch's C-major order, HW lands on the lane axis.
    x = images.reshape(B, C, HW)

    kernel = functools.partial(isic_kernel, hw_total=HW, tile_hw=tile_hw,
                               needs_mask=needs_mask)

    # Explicit scoped-VMEM sizing (safe on v7x's 64 MiB physical VMEM).
    in_bytes = jnp.dtype(images.dtype).itemsize
    est = (4 * tile_f * tile_hw * 4            # elementwise f32 temps (feats/clamp/pow)
           + 2 * C * tile_hw * in_bytes        # double-buffered input tile
           + 2 * tile_f * (C + 2) * 4          # double-buffered weight tiles
           + tile_f * 4)                       # accumulator scratch
    vmem_limit = int(min(56 << 20, max(32 << 20, 2 * est)))

    partial_logits = pl.pallas_call(
        kernel,
        out_shape=jax.ShapeDtypeStruct((B, n_f, 1, 1), jnp.float32),
        grid=(B, n_f, n_s),                    # spatial reduction axis last
        in_specs=[
            # one image x one spatial tile; leading batch dim squeezed
            pl.BlockSpec((None, C, tile_hw), lambda b, f, s: (b, 0, s)),
            pl.BlockSpec((tile_f, C), lambda b, f, s: (f, 0)),   # wcT block
            pl.BlockSpec((tile_f, 1), lambda b, f, s: (f, 0)),   # bc  block
            pl.BlockSpec(memory_space=pltpu.MemorySpace.SMEM),   # p scalar
            pl.BlockSpec((tile_f, 1), lambda b, f, s: (f, 0)),   # wl  block
        ],
        out_specs=pl.BlockSpec((None, None, 1, 1), lambda b, f, s: (b, f, 0, 0)),
        scratch_shapes=[pltpu.VMEM((tile_f, 1), jnp.float32)],   # GeM power-sum acc
        compiler_params=pltpu.CompilerParams(
            # batch & feature-block axes parallel (2 TCs on v7x even at B=1);
            # spatial reduction axis arbitrary.
            dimension_semantics=("parallel", "parallel", "arbitrary"),
            vmem_limit_bytes=vmem_limit,
        ),
    )(x, wcT, bc, params["p"], wl)

    # Tiny epilogue: sum partial logits over F blocks, add bias, sigmoid.
    logits = partial_logits.reshape(B, n_f).sum(axis=1, keepdims=True) + params["bl"]
    return jax.nn.sigmoid(logits)


def init_params(key, c_in, in_features, num_classes=1):
    k1, k2, k3, k4 = jax.random.split(key, 4)
    return {
        # synthetic backbone (1x1 conv stand-in for the timm model), stored
        # transposed as (F, C) so the kernel's VPU MAC reads columns directly
        "wcT": jax.random.normal(k1, (in_features, c_in), jnp.float32) * 0.1,
        "bc": jax.random.normal(k2, (in_features, 1), jnp.float32) * 0.01,
        # GeM learnable exponent p (GeM init: p = 3.0)
        "p": jnp.full((1, 1), 3.0, jnp.float32),
        # classifier Linear(in_features, num_classes=1), stored as a column
        "wl": jax.random.normal(k3, (in_features, num_classes), jnp.float32) * 0.1,
        "bl": jax.random.normal(k4, (1, num_classes), jnp.float32) * 0.01,
    }


def reference_forward(images, params):
    """Pure-JAX reference of the same math (backbone ReLU kept explicitly)."""
    B, C, H, W = images.shape
    xr = images.reshape(B, C, H * W).astype(jnp.float32)
    feats = jnp.einsum("fc,bcs->bfs", params["wcT"], xr) + params["bc"][None, :, :]
    feats = jnp.maximum(feats, 0.0)
    p = params["p"][0, 0]
    pooled = jnp.mean(jnp.maximum(feats, GEM_EPS) ** p, axis=2) ** (1.0 / p)
    return jax.nn.sigmoid(pooled @ params["wl"] + params["bl"])


if __name__ == "__main__":
    key = jax.random.PRNGKey(0)
    k_img, k_par = jax.random.split(key)

    # --- Test 1: divisible shapes, exercises both F-block and spatial tiling ---
    B, C, H, W = 2, 4, 16, 16
    IN_FEATURES = 256

    images = jax.random.normal(k_img, (B, C, H, W), jnp.float32)
    params = init_params(k_par, C, IN_FEATURES, num_classes=1)

    # tile_f=128 -> 2 F blocks; tile_hw=128 -> 2 spatial tiles (accumulator path).
    out = isic_forward(images, params, tile_hw=128, tile_f=128)
    out = jax.block_until_ready(out)
    ref = reference_forward(images, params)

    assert out.shape == (B, 1)
    assert bool(jnp.all(jnp.isfinite(out)))
    assert bool(jnp.all((out >= 0.0) & (out <= 1.0)))
    assert bool(jnp.allclose(out, ref, atol=2e-3, rtol=0.0))

    # --- Test 2: non-divisible H*W (padded+masked tail tile) + padded F block ---
    B2, C2, H2, W2 = 1, 3, 18, 18          # HW = 324, not a multiple of 128
    F2 = 64
    img2 = jax.random.normal(jax.random.PRNGKey(1), (B2, C2, H2, W2), jnp.float32)
    par2 = init_params(jax.random.PRNGKey(2), C2, F2, num_classes=1)
    out2 = jax.block_until_ready(
        isic_forward(img2, par2, tile_hw=128, tile_f=48))   # F padded 64 -> 96
    ref2 = reference_forward(img2, par2)
    assert out2.shape == (B2, 1)
    assert bool(jnp.all(jnp.isfinite(out2)))
    assert bool(jnp.allclose(out2, ref2, atol=2e-3, rtol=0.0))

    print("KERNEL_OK")
</pallas_src>

<mosaic_0001>
module attributes {stable_mosaic.version = 11 : i64} {
  func.func @isic_kernel(%arg0: i32, %arg1: i32, %arg2: i32, %arg3: memref<1x4x128xf32, #tpu.memory_space<vmem>>, %arg4: memref<128x4xf32, #tpu.memory_space<vmem>>, %arg5: memref<128x1xf32, #tpu.memory_space<vmem>>, %arg6: memref<1x1xf32, #tpu.memory_space<smem>>, %arg7: memref<128x1xf32, #tpu.memory_space<vmem>>, %arg8: memref<1x1x1x1xf32, #tpu.memory_space<vmem>>, %arg9: memref<128x1xf32, #tpu.memory_space<vmem>>) attributes {dimension_semantics = [#tpu.dimension_semantics<parallel>, #tpu.dimension_semantics<parallel>, #tpu.dimension_semantics<arbitrary>], iteration_bounds = array<i64: 2, 2, 2>, scalar_prefetch = 0 : i64, scratch_operands = 1 : i64, tpu.core_type = #tpu.core_type<tc>, window_params = [{transform_indices = @transform_0, window_bounds = array<i64: 1, 4, 128>}, {transform_indices = @transform_1, window_bounds = array<i64: 128, 4>}, {transform_indices = @transform_2, window_bounds = array<i64: 128, 1>}, {transform_indices = @transform_3, window_bounds = array<i64: 1, 1>}, {transform_indices = @transform_4, window_bounds = array<i64: 128, 1>}, {transform_indices = @transform_5, window_bounds = array<i64: 1, 1, 1, 1>}]} {
    %c0_i32 = arith.constant 0 : i32
    %0 = arith.cmpi eq, %arg2, %c0_i32 : i32
    %1 = arith.extui %0 : i1 to i32
    %c0_i32_0 = arith.constant 0 : i32
    %2 = arith.cmpi ne, %1, %c0_i32_0 : i32
    scf.if %2 {
      %cst_15 = arith.constant 0.000000e+00 : f32
      %47 = vector.broadcast %cst_15 : f32 to vector<128x1xf32>
      %c0_16 = arith.constant 0 : index
      %c0_17 = arith.constant 0 : index
      %48 = vector.load %arg9[%c0_16, %c0_17] : memref<128x1xf32, #tpu.memory_space<vmem>>, vector<128x1xf32>
      tpu.vector_store %arg9[%c0_16, %c0_17], %47 {strides = array<i32>} : memref<128x1xf32, #tpu.memory_space<vmem>>, vector<128x1xf32>,
    } else {
    }
    %c0 = arith.constant 0 : index
    %c0_1 = arith.constant 0 : index
    %c0_2 = arith.constant 0 : index
    %3 = vector.load %arg3[%c0, %c0_1, %c0_2] : memref<1x4x128xf32, #tpu.memory_space<vmem>>, vector<1x4x128xf32>
    %4 = vector.shape_cast %3 : vector<1x4x128xf32> to vector<4x128xf32>
    %c0_3 = arith.constant 0 : index
    %c0_4 = arith.constant 0 : index
    %5 = vector.load %arg4[%c0_3, %c0_4] : memref<128x4xf32, #tpu.memory_space<vmem>>, vector<128x4xf32>
    %6 = vector.extract_strided_slice %5 {offsets = [0, 0], sizes = [128, 1], strides = [1, 1]} : vector<128x4xf32> to vector<128x1xf32>
    %7 = vector.extract_strided_slice %4 {offsets = [0, 0], sizes = [1, 128], strides = [1, 1]} : vector<4x128xf32> to vector<1x128xf32>
    %8 = vector.broadcast %6 : vector<128x1xf32> to vector<128x128xf32>
    %9 = vector.broadcast %7 : vector<1x128xf32> to vector<128x128xf32>
    %10 = arith.mulf %8, %9 : vector<128x128xf32>
    %11 = vector.extract_strided_slice %5 {offsets = [0, 1], sizes = [128, 1], strides = [1, 1]} : vector<128x4xf32> to vector<128x1xf32>
    %12 = vector.extract_strided_slice %4 {offsets = [1, 0], sizes = [1, 128], strides = [1, 1]} : vector<4x128xf32> to vector<1x128xf32>
    %13 = vector.broadcast %11 : vector<128x1xf32> to vector<128x128xf32>
    %14 = vector.broadcast %12 : vector<1x128xf32> to vector<128x128xf32>
    %15 = arith.mulf %13, %14 : vector<128x128xf32>
    %16 = arith.addf %10, %15 : vector<128x128xf32>
    %17 = vector.extract_strided_slice %5 {offsets = [0, 2], sizes = [128, 1], strides = [1, 1]} : vector<128x4xf32> to vector<128x1xf32>
    %18 = vector.extract_strided_slice %4 {offsets = [2, 0], sizes = [1, 128], strides = [1, 1]} : vector<4x128xf32> to vector<1x128xf32>
    %19 = vector.broadcast %17 : vector<128x1xf32> to vector<128x128xf32>
    %20 = vector.broadcast %18 : vector<1x128xf32> to vector<128x128xf32>
    %21 = arith.mulf %19, %20 : vector<128x128xf32>
    %22 = arith.addf %16, %21 : vector<128x128xf32>
    %23 = vector.extract_strided_slice %5 {offsets = [0, 3], sizes = [128, 1], strides = [1, 1]} : vector<128x4xf32> to vector<128x1xf32>
    %24 = vector.extract_strided_slice %4 {offsets = [3, 0], sizes = [1, 128], strides = [1, 1]} : vector<4x128xf32> to vector<1x128xf32>
    %25 = vector.broadcast %23 : vector<128x1xf32> to vector<128x128xf32>
    %26 = vector.broadcast %24 : vector<1x128xf32> to vector<128x128xf32>
    %27 = arith.mulf %25, %26 : vector<128x128xf32>
    %28 = arith.addf %22, %27 : vector<128x128xf32>
    %c0_5 = arith.constant 0 : index
    %c0_6 = arith.constant 0 : index
    %29 = vector.load %arg5[%c0_5, %c0_6] : memref<128x1xf32, #tpu.memory_space<vmem>>, vector<128x1xf32>
    %30 = vector.broadcast %29 : vector<128x1xf32> to vector<128x128xf32>
    %31 = arith.addf %28, %30 : vector<128x128xf32>
    %c0_7 = arith.constant 0 : index
    %c0_8 = arith.constant 0 : index
    %32 = memref.load %arg6[%c0_7, %c0_8] : memref<1x1xf32, #tpu.memory_space<smem>>
    %cst = arith.constant 9.99999997E-7 : f32
    %33 = vector.broadcast %cst : f32 to vector<128x128xf32>
    %34 = arith.maximumf %31, %33 : vector<128x128xf32>
    %35 = math.log %34 : vector<128x128xf32>
    %36 = vector.broadcast %32 : f32 to vector<128x128xf32>
    %37 = arith.mulf %36, %35 : vector<128x128xf32>
    %38 = math.exp %37 : vector<128x128xf32>
    %c0_9 = arith.constant 0 : index
    %c0_10 = arith.constant 0 : index
    %39 = vector.load %arg9[%c0_9, %c0_10] : memref<128x1xf32, #tpu.memory_space<vmem>>, vector<128x1xf32>
    %cst_11 = arith.constant dense<0.000000e+00> : vector<128xf32>
    %40 = vector.multi_reduction <add>, %38, %cst_11 [1] : vector<128x128xf32> to vector<128xf32>
    %41 = vector.shape_cast %40 : vector<128xf32> to vector<128x1xf32>
    %42 = arith.addf %39, %41 : vector<128x1xf32>
    %c0_12 = arith.constant 0 : index
    %c0_13 = arith.constant 0 : index
    %43 = vector.load %arg9[%c0_12, %c0_13] : memref<128x1xf32, #tpu.memory_space<vmem>>, vector<128x1xf32>
    tpu.vector_store %arg9[%c0_12, %c0_13], %42 {strides = array<i32>} : memref<128x1xf32, #tpu.memory_space<vmem>>, vector<128x1xf32>,
    %c1_i32 = arith.constant 1 : i32
    %44 = arith.cmpi eq, %arg2, %c1_i32 : i32
    %45 = arith.extui %44 : i1 to i32
    %c0_i32_14 = arith.constant 0 : i32
    %46 = arith.cmpi ne, %45, %c0_i32_14 : i32
    scf.if %46 {
      %c0_15 = arith.constant 0 : index
      %c0_16 = arith.constant 0 : index
      %47 = vector.load %arg9[%c0_15, %c0_16] : memref<128x1xf32, #tpu.memory_space<vmem>>, vector<128x1xf32>
      %cst_17 = arith.constant 3.906250e-03 : f32
      %48 = vector.broadcast %cst_17 : f32 to vector<128x1xf32>
      %49 = arith.mulf %47, %48 : vector<128x1xf32>
      %50 = math.log %49 : vector<128x1xf32>
      %51 = vector.broadcast %32 : f32 to vector<128x1xf32>
      %52 = arith.divf %50, %51 : vector<128x1xf32>
      %53 = math.exp %52 : vector<128x1xf32>
      %c0_18 = arith.constant 0 : index
      %c0_19 = arith.constant 0 : index
      %54 = vector.load %arg7[%c0_18, %c0_19] : memref<128x1xf32, #tpu.memory_space<vmem>>, vector<128x1xf32>
      %55 = arith.mulf %53, %54 : vector<128x1xf32>
      %cst_20 = arith.constant dense<0.000000e+00> : vector<1xf32>
      %56 = vector.multi_reduction <add>, %55, %cst_20 [0] : vector<128x1xf32> to vector<1xf32>
      %57 = vector.shape_cast %56 : vector<1xf32> to vector<1x1xf32>
      %c0_21 = arith.constant 0 : index
      %c0_22 = arith.constant 0 : index
      %c0_23 = arith.constant 0 : index
      %c0_24 = arith.constant 0 : index
      %58 = vector.load %arg8[%c0_21, %c0_22, %c0_23, %c0_24] : memref<1x1x1x1xf32, #tpu.memory_space<vmem>>, vector<1x1x1x1xf32>
      %59 = vector.shape_cast %58 : vector<1x1x1x1xf32> to vector<1x1xf32>
      %60 = vector.shape_cast %57 : vector<1x1xf32> to vector<1x1x1x1xf32>
      tpu.vector_store %arg8[%c0_21, %c0_22, %c0_23, %c0_24], %60 {strides = array<i32>} : memref<1x1x1x1xf32, #tpu.memory_space<vmem>>, vector<1x1x1x1xf32>,
    } else {
    }
    return
  }
  func.func @transform_0(%arg0: i32, %arg1: i32, %arg2: i32) -> (i32, i32, i32) {
    %c0_i32 = arith.constant 0 : i32
    %c0_i32_0 = arith.constant 0 : i32
    return %arg0, %c0_i32, %arg2 : i32, i32, i32
  }
  func.func @transform_1(%arg0: i32, %arg1: i32, %arg2: i32) -> (i32, i32) {
    %c0_i32 = arith.constant 0 : i32
    %c0_i32_0 = arith.constant 0 : i32
    return %arg1, %c0_i32 : i32, i32
  }
  func.func @transform_2(%arg0: i32, %arg1: i32, %arg2: i32) -> (i32, i32) {
    %c0_i32 = arith.constant 0 : i32
    %c0_i32_0 = arith.constant 0 : i32
    return %arg1, %c0_i32 : i32, i32
  }
  func.func @transform_3(%arg0: i32, %arg1: i32, %arg2: i32) -> (i32, i32) {
    %c0_i32 = arith.constant 0 : i32
    %c0_i32_0 = arith.constant 0 : i32
    %c0_i32_1 = arith.constant 0 : i32
    return %c0_i32, %c0_i32_0 : i32, i32
  }
  func.func @transform_4(%arg0: i32, %arg1: i32, %arg2: i32) -> (i32, i32) {
    %c0_i32 = arith.constant 0 : i32
    %c0_i32_0 = arith.constant 0 : i32
    return %arg1, %c0_i32 : i32, i32
  }
  func.func @transform_5(%arg0: i32, %arg1: i32, %arg2: i32) -> (i32, i32, i32, i32) {
    %c0_i32 = arith.constant 0 : i32
    %c0_i32_0 = arith.constant 0 : i32
    %c0_i32_1 = arith.constant 0 : i32
    return %arg0, %arg1, %c0_i32, %c0_i32_0 : i32, i32, i32, i32
  }
}

</mosaic_0001>

<llo_original>
// kernel: tpu_custom_call.1
$region0: #{tpu_custom_call.1}
  #allocation0 [shape = 'u32[]', space=smem, size = 0x4, offset = 0x4, fixed_abs, tag = 'smem constant byte address 0x4 - core index']
  #allocation1 [shape = 'u32[144,128]{1,0:T(1,128)}', space=vmem, size = 0x12000, scoped, tag = 'internal scratch']
  #allocation2 [shape = 'f32[128,1]{1,0:T(8,128)}', space=vmem, size = 0x10000, scoped, tag = 'scratch operand']
  #allocation3 [shape = 'f32[1,1]{1,0:T(1,128)S(6)}', space=smem, size = 0x200, scoped, tag = 'scoped memory for tpu_custom_call.1']
  %s0 = inlined_call_operand.vmem [shape: f32[2,4,256], index: 0, kind: input, shape index: {}]
  %s1 = inlined_call_operand.vmem [shape: f32[256,4], index: 1, kind: input, shape index: {}]
  %s2 = inlined_call_operand.vmem [shape: f32[256,1], index: 2, kind: input, shape index: {}]
  %s3 = inlined_call_operand.<no memory space> [shape: f32[1,1], index: 3, kind: input, shape index: {}]
  %s4 = inlined_call_operand.vmem [shape: f32[256,1], index: 4, kind: input, shape index: {}]
  %s5 = inlined_call_operand.vmem [shape: f32[2,2,1,1], index: 5, kind: output, shape index: {}]
  %s6 = sld [smem:[#allocation0]]
  $region61: #{tpu_custom_call.1} parent=0
    _
  %s8 = ssub.s32 1, %s6
  %s9 = scalar_select 0, %s8, %s6
  %10 = sst [smem:[#allocation3]] %s3
  loop: start=0, step=1, limit=10
  $region2: #{tpu_custom_call.1} parent=0 // loop_pre_header
    _
  $region3: #{tpu_custom_call.1} parent=0 // loop_header
    %s12 = sphi 0, %s16
    %p13 = scmp.ge.s32.totalorder %s12, 10
    %s19 = sphi 0, %s38
    %s20 = sphi 0, %s34
    %s21 = sphi 0, %s30
    %s22 = sphi 0, %s19
    %s23 = sphi 0, %s20
    %s24 = sphi 0, %s21
    %s25 = sphi 0, %s22
    %s26 = sphi 0, %s23
    %s27 = sphi 0, %s24
    %s43 = sphi 0, %s45
    %s46 = sphi 0, %s43
    %s47 = sphi 0, %s46
    %s63 = sphi 0, %s47
    %s69 = sphi 0, %s71
    %s72 = sphi 0, %s69
    %s73 = sphi 0, %s72
    %s89 = sphi 0, %s73
    %s95 = sphi 0, %s97
    %s98 = sphi 0, %s95
    %s99 = sphi 0, %s98
    %s115 = sphi 0, %s99
    %s119 = sphi 0, %s119
    %s121 = sphi 0, %s119
    %s122 = sphi 0, %s121
    %s136 = sphi 0, %s122
    %s142 = sphi 0, %s144
    %s145 = sphi 0, %s142
    %s146 = sphi 0, %s145
    %s162 = sphi 0, %s146
    %s170 = sphi 0, %s172
    %s173 = sphi 0, %s170
    %s174 = sphi 0, %s173
    %s190 = sphi 0, %s174
  $region4: #{tpu_custom_call.1} parent=0 // loop_header_branch
    %15 = sbr.rel (%p13) target = $region8
  $region5: #{tpu_custom_call.1} parent=0 // loop_body
    %s17 = ssub.s32 %s12, 1
    %s18 = ssub.s32 %s12, 2
    %s28 = sadd.s32 1, %s21
    %p29 = scmp.ge.s32.totalorder %s28, 2
    %s30 = scalar_select %p29, 0, %s28
    %s31 = sadd.s32 1, %s20
    %s32 = scalar_select %p29, %s31, %s20
    %p33 = scmp.ge.s32.totalorder %s32, 2
    %s34 = scalar_select %p33, 0, %s32
    %s35 = sadd.s32 1, %s19
    %s36 = scalar_select %p33, %s35, %s19
    %p37 = scmp.ge.s32.totalorder %s36, 2
    %s38 = scalar_select %p37, 0, %s36
    %s39 = ssub.s32 %s19, %s38
    %s40 = ssub.s32 %s21, %s30
    %s41 = sor.u32 %s39, %s40
    %p42 = scmp.eq.s32.totalorder %s41, 0
    %s44 = sadd.s32 %s43, 1
    %s45 = scalar_select %p42, %s43, %s44
    %p48 = pneg %p42
    %p49 = scmp.eq.s32.totalorder %s12, 7
    %p50 = por %p48, %p49
    %p51 = scmp.ne.s32.totalorder %s43, %s46
    %p52 = scmp.eq.s32.totalorder %s12, 0
    %p53 = por %p51, %p52
    %p54 = scmp.ne.s32.totalorder %s43, %s46
    %p55 = scmp.eq.s32.totalorder %s17, 7
    %p56 = por %p54, %p55
    %p57 = scmp.ne.s32.totalorder %s46, %s47
    %p58 = scmp.eq.s32.totalorder %s17, 0
    %p59 = por %p57, %p58
    %p60 = scmp.ne.s32.totalorder %s46, %s47
    %p61 = scmp.eq.s32.totalorder %s18, 7
    %p62 = por %p60, %p61
    %p64 = scmp.ne.s32.totalorder %s47, %s63
    %p65 = scmp.eq.s32.totalorder %s18, 0
    %p66 = por %p64, %p65
    %s67 = ssub.s32 %s20, %s34
    %p68 = scmp.eq.s32.totalorder %s67, 0
    %s70 = sadd.s32 %s69, 1
    %s71 = scalar_select %p68, %s69, %s70
    %p74 = pneg %p68
    %p75 = scmp.eq.s32.totalorder %s12, 7
    %p76 = por %p74, %p75
    %p77 = scmp.ne.s32.totalorder %s69, %s72
    %p78 = scmp.eq.s32.totalorder %s12, 0
    %p79 = por %p77, %p78
    %p80 = scmp.ne.s32.totalorder %s69, %s72
    %p81 = scmp.eq.s32.totalorder %s17, 7
    %p82 = por %p80, %p81
    %p83 = scmp.ne.s32.totalorder %s72, %s73
    %p84 = scmp.eq.s32.totalorder %s17, 0
    %p85 = por %p83, %p84
    %p86 = scmp.ne.s32.totalorder %s72, %s73
    %p87 = scmp.eq.s32.totalorder %s18, 7
    %p88 = por %p86, %p87
    %p90 = scmp.ne.s32.totalorder %s73, %s89
    %p91 = scmp.eq.s32.totalorder %s18, 0
    %p92 = por %p90, %p91
    %s93 = ssub.s32 %s20, %s34
    %p94 = scmp.eq.s32.totalorder %s93, 0
    %s96 = sadd.s32 %s95, 1
    %s97 = scalar_select %p94, %s95, %s96
    %p100 = pneg %p94
    %p101 = scmp.eq.s32.totalorder %s12, 7
    %p102 = por %p100, %p101
    %p103 = scmp.ne.s32.totalorder %s95, %s98
    %p104 = scmp.eq.s32.totalorder %s12, 0
    %p105 = por %p103, %p104
    %p106 = scmp.ne.s32.totalorder %s95, %s98
    %p107 = scmp.eq.s32.totalorder %s17, 7
    %p108 = por %p106, %p107
    %p109 = scmp.ne.s32.totalorder %s98, %s99
    %p110 = scmp.eq.s32.totalorder %s17, 0
    %p111 = por %p109, %p110
    %p112 = scmp.ne.s32.totalorder %s98, %s99
    %p113 = scmp.eq.s32.totalorder %s18, 7
    %p114 = por %p112, %p113
    %p116 = scmp.ne.s32.totalorder %s99, %s115
    %p117 = scmp.eq.s32.totalorder %s18, 0
    %p118 = por %p116, %p117
    %s120 = sadd.s32 %s119, 1
    %p123 = scmp.eq.s32.totalorder %s12, 7
    %p124 = scmp.ne.s32.totalorder %s119, %s121
    %p125 = scmp.eq.s32.totalorder %s12, 0
    %p126 = por %p124, %p125
    %p127 = scmp.ne.s32.totalorder %s119, %s121
    %p128 = scmp.eq.s32.totalorder %s17, 7
    %p129 = por %p127, %p128
    %p130 = scmp.ne.s32.totalorder %s121, %s122
    %p131 = scmp.eq.s32.totalorder %s17, 0
    %p132 = por %p130, %p131
    %p133 = scmp.ne.s32.totalorder %s121, %s122
    %p134 = scmp.eq.s32.totalorder %s18, 7
    %p135 = por %p133, %p134
    %p137 = scmp.ne.s32.totalorder %s122, %s136
    %p138 = scmp.eq.s32.totalorder %s18, 0
    %p139 = por %p137, %p138
    %s140 = ssub.s32 %s20, %s34
    %p141 = scmp.eq.s32.totalorder %s140, 0
    %s143 = sadd.s32 %s142, 1
    %s144 = scalar_select %p141, %s142, %s143
    %p147 = pneg %p141
    %p148 = scmp.eq.s32.totalorder %s12, 7
    %p149 = por %p147, %p148
    %p150 = scmp.ne.s32.totalorder %s142, %s145
    %p151 = scmp.eq.s32.totalorder %s12, 0
    %p152 = por %p150, %p151
    %p153 = scmp.ne.s32.totalorder %s142, %s145
    %p154 = scmp.eq.s32.totalorder %s17, 7
    %p155 = por %p153, %p154
    %p156 = scmp.ne.s32.totalorder %s145, %s146
    %p157 = scmp.eq.s32.totalorder %s17, 0
    %p158 = por %p156, %p157
    %p159 = scmp.ne.s32.totalorder %s145, %s146
    %p160 = scmp.eq.s32.totalorder %s18, 7
    %p161 = por %p159, %p160
    %p163 = scmp.ne.s32.totalorder %s146, %s162
    %p164 = scmp.eq.s32.totalorder %s18, 0
    %p165 = por %p163, %p164
    %s166 = ssub.s32 %s19, %s38
    %s167 = ssub.s32 %s20, %s34
    %s168 = sor.u32 %s166, %s167
    %p169 = scmp.eq.s32.totalorder %s168, 0
    %s171 = sadd.s32 %s170, 1
    %s172 = scalar_select %p169, %s170, %s171
    %p175 = pneg %p169
    %p176 = scmp.eq.s32.totalorder %s12, 7
    %p177 = por %p175, %p176
    %p178 = scmp.ne.s32.totalorder %s170, %s173
    %p179 = scmp.eq.s32.totalorder %s12, 0
    %p180 = por %p178, %p179
    %p181 = scmp.ne.s32.totalorder %s170, %s173
    %p182 = scmp.eq.s32.totalorder %s17, 7
    %p183 = por %p181, %p182
    %p184 = scmp.ne.s32.totalorder %s173, %s174
    %p185 = scmp.eq.s32.totalorder %s17, 0
    %p186 = por %p184, %p185
    %p187 = scmp.ne.s32.totalorder %s173, %s174
    %p188 = scmp.eq.s32.totalorder %s18, 7
    %p189 = por %p187, %p188
    %p191 = scmp.ne.s32.totalorder %s174, %s190
    %p192 = scmp.eq.s32.totalorder %s18, 0
    %p193 = por %p191, %p192
    %p194 = scmp.le.s32.totalorder 1, %s12
    %p195 = scmp.lt.s32.totalorder %s12, 9
    %p196 = pnand %p194, %p195
    %p197 = pneg %p196
    // Predicated region
    $region9: #{tpu_custom_call.1} parent=5 // pred_check
      _
    $region10: #{tpu_custom_call.1} parent=5 // pred_check_branch
      %199 = sbr.rel (%p196) target = $region12
    $region11: #{tpu_custom_call.1} parent=5 // pred_region
      %s200 = ssub.s32 %s12, 1
      // Predicated region
      $region13: #{tpu_custom_call.1} parent=11 // pred_check
        %p201 = pneg %p132
      $region14: #{tpu_custom_call.1} parent=11 // pred_check_branch
        %203 = sbr.rel (%p201) target = $region16
      $region15: #{tpu_custom_call.1} parent=11 // pred_region
        _
      $region16: #{tpu_custom_call.1} parent=11 // pred_fallthru
        _
    $region12: #{tpu_custom_call.1} parent=5 // pred_fallthru
      _
    %p204 = scmp.lt.s32.totalorder %s12, 8
    // Predicated region
    $region17: #{tpu_custom_call.1} parent=5 // pred_check
      %p205 = pneg %p204
    $region18: #{tpu_custom_call.1} parent=5 // pred_check_branch
      %207 = sbr.rel (%p205) target = $region20
    $region19: #{tpu_custom_call.1} parent=5 // pred_region
      // Predicated region
      $region21: #{tpu_custom_call.1} parent=19 // pred_check
        %p208 = pneg %p53
      $region22: #{tpu_custom_call.1} parent=19 // pred_check_branch
        %210 = sbr.rel (%p208) target = $region24
      $region23: #{tpu_custom_call.1} parent=19 // pred_region
        %p211 = scmp.lt.s32.totalorder %s19, 1
        %s212 = scalar_select %p211, %s19, 1
        %p213 = scmp.lt.s32.totalorder %s21, 1
        %s214 = scalar_select %p213, %s21, 1
        %s215 = smul.addr %s212, 2
        %s216 = sadd.s32 %s214, %s215
        %s217 = smul.addr %s216, 4
        %s218 = scalar_lea.vmem %s0, %s217
      $region24: #{tpu_custom_call.1} parent=19 // pred_fallthru
        _
      // Predicated region
      $region25: #{tpu_custom_call.1} parent=19 // pred_check
        %p219 = pneg %p79
      $region26: #{tpu_custom_call.1} parent=19 // pred_check_branch
        %221 = sbr.rel (%p219) target = $region28
      $region27: #{tpu_custom_call.1} parent=19 // pred_region
        %s222 = smul.u32 16, %s20
        %p223 = scmp.lt.s32.totalorder %s222, 31
        %s224 = scalar_select %p223, %s222, 31
        %s225 = smul.addr %s224, 8
        %s226 = scalar_lea.vmem %s1, %s225
        %s227 = smul.u32 16, %s20
      $region28: #{tpu_custom_call.1} parent=19 // pred_fallthru
        _
      // Predicated region
      $region29: #{tpu_custom_call.1} parent=19 // pred_check
        %p228 = pneg %p105
      $region30: #{tpu_custom_call.1} parent=19 // pred_check_branch
        %230 = sbr.rel (%p228) target = $region32
      $region31: #{tpu_custom_call.1} parent=19 // pred_region
        %s231 = smul.u32 16, %s20
        %p232 = scmp.lt.s32.totalorder %s231, 31
        %s233 = scalar_select %p232, %s231, 31
        %s234 = smul.addr %s233, 8
        %s235 = scalar_lea.vmem %s2, %s234
        %s236 = smul.u32 16, %s20
      $region32: #{tpu_custom_call.1} parent=19 // pred_fallthru
        _
      // Predicated region
      $region33: #{tpu_custom_call.1} parent=19 // pred_check
        %p237 = pneg %p152
      $region34: #{tpu_custom_call.1} parent=19 // pred_check_branch
        %239 = sbr.rel (%p237) target = $region36
      $region35: #{tpu_custom_call.1} parent=19 // pred_region
        %s240 = smul.u32 16, %s20
        %p241 = scmp.lt.s32.totalorder %s240, 31
        %s242 = scalar_select %p241, %s240, 31
        %s243 = smul.addr %s242, 8
        %s244 = scalar_lea.vmem %s4, %s243
        %s245 = smul.u32 16, %s20
      $region36: #{tpu_custom_call.1} parent=19 // pred_fallthru
        _
    $region20: #{tpu_custom_call.1} parent=5 // pred_fallthru
      _
    %p246 = scmp.le.s32.totalorder 1, %s12
    %p247 = scmp.lt.s32.totalorder %s12, 9
    %p248 = pnand %p246, %p247
    %p249 = pneg %p248
    // Predicated region
    $region37: #{tpu_custom_call.1} parent=5 // pred_check
      _
    $region38: #{tpu_custom_call.1} parent=5 // pred_check_branch
      %251 = sbr.rel (%p248) target = $region40
    $region39: #{tpu_custom_call.1} parent=5 // pred_region
      %s252 = ssub.s32 %s12, 1
      %p253 = scmp.lt.s32.totalorder %s22, 1
      %s254 = scalar_select %p253, %s22, 1
      %p255 = scmp.lt.s32.totalorder %s24, 1
      %s256 = scalar_select %p255, %s24, 1
      %s257 = smul.addr %s254, 2
      %s258 = sadd.s32 %s256, %s257
      %s259 = smul.addr %s258, 4
      %s260 = scalar_lea.vmem %s0, %s259
      %p261 = pneg %p59
      %p262 = pneg %p56
      %s263 = smul.u32 16, %s23
      %p264 = scmp.lt.s32.totalorder %s263, 31
      %s265 = scalar_select %p264, %s263, 31
      %s266 = smul.addr %s265, 8
      %s267 = scalar_lea.vmem %s1, %s266
      %p268 = pneg %p85
      %p269 = pneg %p82
      %s270 = smul.u32 16, %s23
      %p271 = scmp.lt.s32.totalorder %s270, 31
      %s272 = scalar_select %p271, %s270, 31
      %s273 = smul.addr %s272, 8
      %s274 = scalar_lea.vmem %s2, %s273
      %p275 = pneg %p111
      %p276 = pneg %p108
      %p277 = pneg %p132
      %p278 = pneg %p129
      %s279 = smul.u32 16, %s23
      %p280 = scmp.lt.s32.totalorder %s279, 31
      %s281 = scalar_select %p280, %s279, 31
      %s282 = smul.addr %s281, 8
      %s283 = scalar_lea.vmem %s4, %s282
      %p284 = pneg %p158
      %p285 = pneg %p155
      %p286 = pneg %p186
      %p287 = pneg %p183
      %p288 = scmp.lt.s32.totalorder %s22, 1
      %s289 = scalar_select %p288, %s22, 1
      %p290 = scmp.lt.s32.totalorder %s23, 1
      %s291 = scalar_select %p290, %s23, 1
      %s292 = smul.addr %s289, 2
      %s293 = sadd.s32 %s291, %s292
      %s294 = scalar_lea.vmem %s5, %s293
      %p295 = scmp.lt.s32.totalorder %s22, 1
      %s296 = scalar_select %p295, %s22, 1
      %p297 = scmp.lt.s32.totalorder %s24, 1
      %s298 = scalar_select %p297, %s24, 1
      %s299 = smul.addr %s296, 2
      %s300 = sadd.s32 %s298, %s299
      %s301 = smul.addr %s300, 4
      %s302 = scalar_lea.vmem %s0, %s301
      %s303 = smul.u32 16, %s23
      %p304 = scmp.lt.s32.totalorder %s303, 31
      %s305 = scalar_select %p304, %s303, 31
      %s306 = smul.addr %s305, 8
      %s307 = scalar_lea.vmem %s1, %s306
      %s308 = smul.u32 16, %s23
      %s309 = smul.u32 16, %s23
      %p310 = scmp.lt.s32.totalorder %s309, 31
      %s311 = scalar_select %p310, %s309, 31
      %s312 = smul.addr %s311, 8
      %s313 = scalar_lea.vmem %s2, %s312
      %s314 = smul.u32 16, %s23
      %s315 = smul.u32 16, %s23
      %p316 = scmp.lt.s32.totalorder %s315, 31
      %s317 = scalar_select %p316, %s315, 31
      %s318 = smul.addr %s317, 8
      %s319 = scalar_lea.vmem %s4, %s318
      %s320 = smul.u32 16, %s23
      %p321 = scmp.lt.s32.totalorder %s22, 1
      %s322 = scalar_select %p321, %s22, 1
      %p323 = scmp.lt.s32.totalorder %s23, 1
      %s324 = scalar_select %p323, %s23, 1
      %s325 = smul.addr %s322, 2
      %s326 = sadd.s32 %s324, %s325
      %s327 = scalar_lea.vmem %s5, %s326
      %p328 = scmp.eq.s32.totalorder %s24, 0
      // Predicated region
      $region41: #{tpu_custom_call.1} parent=39 // pred_check
        %p329 = pneg %p328
      $region42: #{tpu_custom_call.1} parent=39 // pred_check_branch
        %331 = sbr.rel (%p329) target = $region44
      $region43: #{tpu_custom_call.1} parent=39 // pred_region
        %vm332 = vcmask 7168
        %333 = vst.msk [vmem:[#allocation2] sm:$0xff] %vm332, 0.0
        %334 = vst.msk [vmem:[#allocation2 + $0x8] sm:$0xff] %vm332, 0.0
        %335 = vst.msk [vmem:[#allocation2 + $0x10] sm:$0xff] %vm332, 0.0
        %336 = vst.msk [vmem:[#allocation2 + $0x18] sm:$0xff] %vm332, 0.0
        %337 = vst.msk [vmem:[#allocation2 + $0x20] sm:$0xff] %vm332, 0.0
        %338 = vst.msk [vmem:[#allocation2 + $0x28] sm:$0xff] %vm332, 0.0
        %339 = vst.msk [vmem:[#allocation2 + $0x30] sm:$0xff] %vm332, 0.0
        %340 = vst.msk [vmem:[#allocation2 + $0x38] sm:$0xff] %vm332, 0.0
        %341 = vst.msk [vmem:[#allocation2 + $0x40] sm:$0xff] %vm332, 0.0
        %342 = vst.msk [vmem:[#allocation2 + $0x48] sm:$0xff] %vm332, 0.0
        %343 = vst.msk [vmem:[#allocation2 + $0x50] sm:$0xff] %vm332, 0.0
        %344 = vst.msk [vmem:[#allocation2 + $0x58] sm:$0xff] %vm332, 0.0
        %345 = vst.msk [vmem:[#allocation2 + $0x60] sm:$0xff] %vm332, 0.0
        %346 = vst.msk [vmem:[#allocation2 + $0x68] sm:$0xff] %vm332, 0.0
        %347 = vst.msk [vmem:[#allocation2 + $0x70] sm:$0xff] %vm332, 0.0
        %348 = vst.msk [vmem:[#allocation2 + $0x78] sm:$0xff] %vm332, 0.0
      $region44: #{tpu_custom_call.1} parent=39 // pred_fallthru
        _
      %v349 = vld [vmem:[%s302] sm:$0xf]
      %v350 = vld [vmem:[%s307] sm:$0xff]
      %v351 = vld [vmem:[%s307 + $0x8] sm:$0xff]
      %v352 = vld [vmem:[%s307 + $0x10] sm:$0xff]
      %v353 = vld [vmem:[%s307 + $0x18] sm:$0xff]
      %v354 = vld [vmem:[%s307 + $0x20] sm:$0xff]
      %v355 = vld [vmem:[%s307 + $0x28] sm:$0xff]
      %v356 = vld [vmem:[%s307 + $0x30] sm:$0xff]
      %v357 = vld [vmem:[%s307 + $0x38] sm:$0xff]
      %v358 = vld [vmem:[%s307 + $0x40] sm:$0xff]
      %v359 = vld [vmem:[%s307 + $0x48] sm:$0xff]
      %v360 = vld [vmem:[%s307 + $0x50] sm:$0xff]
      %v361 = vld [vmem:[%s307 + $0x58] sm:$0xff]
      %v362 = vld [vmem:[%s307 + $0x60] sm:$0xff]
      %v363 = vld [vmem:[%s307 + $0x68] sm:$0xff]
      %v364 = vld [vmem:[%s307 + $0x70] sm:$0xff]
      %v365 = vld [vmem:[%s307 + $0x78] sm:$0xff]
      %367 = vset.pattern.permute.xlu0 0
      %368 = vperm.xlu0 %367, %v350
      %v369 = vpop.permute.xlu0 %368
      %372 = vset.pattern.permute.xlu0 0
      %373 = vperm.xlu0 %372, %v351
      %v374 = vpop.permute.xlu0 %373
      %377 = vset.pattern.permute.xlu0 0
      %378 = vperm.xlu0 %377, %v352
      %v379 = vpop.permute.xlu0 %378
      %382 = vset.pattern.permute.xlu0 0
      %383 = vperm.xlu0 %382, %v353
      %v384 = vpop.permute.xlu0 %383
      %387 = vset.pattern.permute.xlu0 0
      %388 = vperm.xlu0 %387, %v354
      %v389 = vpop.permute.xlu0 %388
      %392 = vset.pattern.permute.xlu0 0
      %393 = vperm.xlu0 %392, %v355
      %v394 = vpop.permute.xlu0 %393
      %397 = vset.pattern.permute.xlu0 0
      %398 = vperm.xlu0 %397, %v356
      %v399 = vpop.permute.xlu0 %398
      %402 = vset.pattern.permute.xlu0 0
      %403 = vperm.xlu0 %402, %v357
      %v404 = vpop.permute.xlu0 %403
      %407 = vset.pattern.permute.xlu0 0
      %408 = vperm.xlu0 %407, %v358
      %v409 = vpop.permute.xlu0 %408
      %412 = vset.pattern.permute.xlu0 0
      %413 = vperm.xlu0 %412, %v359
      %v414 = vpop.permute.xlu0 %413
      %417 = vset.pattern.permute.xlu0 0
      %418 = vperm.xlu0 %417, %v360
      %v419 = vpop.permute.xlu0 %418
      %422 = vset.pattern.permute.xlu0 0
      %423 = vperm.xlu0 %422, %v361
      %v424 = vpop.permute.xlu0 %423
      %427 = vset.pattern.permute.xlu0 0
      %428 = vperm.xlu0 %427, %v362
      %v429 = vpop.permute.xlu0 %428
      %432 = vset.pattern.permute.xlu0 0
      %433 = vperm.xlu0 %432, %v363
      %v434 = vpop.permute.xlu0 %433
      %437 = vset.pattern.permute.xlu0 0
      %438 = vperm.xlu0 %437, %v364
      %v439 = vpop.permute.xlu0 %438
      %442 = vset.pattern.permute.xlu0 0
      %443 = vperm.xlu0 %442, %v365
      %v444 = vpop.permute.xlu0 %443
      %v446 = vlaneseq
      %v447 = vshrl.u32 %v446, 7
      %v448 = vsub.s32 0, %v447
      %v449 = vrot.slane %v349, %v448
      %v450 = vmul.f32 %v369, %v449
      %v451 = vmul.f32 %v374, %v449
      %v452 = vmul.f32 %v379, %v449
      %v453 = vmul.f32 %v384, %v449
      %v454 = vmul.f32 %v389, %v449
      %v455 = vmul.f32 %v394, %v449
      %v456 = vmul.f32 %v399, %v449
      %v457 = vmul.f32 %v404, %v449
      %v458 = vmul.f32 %v409, %v449
      %v459 = vmul.f32 %v414, %v449
      %v460 = vmul.f32 %v419, %v449
      %v461 = vmul.f32 %v424, %v449
      %v462 = vmul.f32 %v429, %v449
      %v463 = vmul.f32 %v434, %v449
      %v464 = vmul.f32 %v439, %v449
      %v465 = vmul.f32 %v444, %v449
      %466 = vset.pattern.permute.xlu0 1
      %467 = vperm.xlu0 %466, %v350
      %v468 = vpop.permute.xlu0 %467
      %470 = vset.pattern.permute.xlu0 1
      %471 = vperm.xlu0 %470, %v351
      %v472 = vpop.permute.xlu0 %471
      %474 = vset.pattern.permute.xlu0 1
      %475 = vperm.xlu0 %474, %v352
      %v476 = vpop.permute.xlu0 %475
      %478 = vset.pattern.permute.xlu0 1
      %479 = vperm.xlu0 %478, %v353
      %v480 = vpop.permute.xlu0 %479
      %482 = vset.pattern.permute.xlu0 1
      %483 = vperm.xlu0 %482, %v354
      %v484 = vpop.permute.xlu0 %483
      %486 = vset.pattern.permute.xlu0 1
      %487 = vperm.xlu0 %486, %v355
      %v488 = vpop.permute.xlu0 %487
      %490 = vset.pattern.permute.xlu0 1
      %491 = vperm.xlu0 %490, %v356
      %v492 = vpop.permute.xlu0 %491
      %494 = vset.pattern.permute.xlu0 1
      %495 = vperm.xlu0 %494, %v357
      %v496 = vpop.permute.xlu0 %495
      %498 = vset.pattern.permute.xlu0 1
      %499 = vperm.xlu0 %498, %v358
      %v500 = vpop.permute.xlu0 %499
      %502 = vset.pattern.permute.xlu0 1
      %503 = vperm.xlu0 %502, %v359
      %v504 = vpop.permute.xlu0 %503
      %506 = vset.pattern.permute.xlu0 1
      %507 = vperm.xlu0 %506, %v360
      %v508 = vpop.permute.xlu0 %507
      %510 = vset.pattern.permute.xlu0 1
      %511 = vperm.xlu0 %510, %v361
      %v512 = vpop.permute.xlu0 %511
      %514 = vset.pattern.permute.xlu0 1
      %515 = vperm.xlu0 %514, %v362
      %v516 = vpop.permute.xlu0 %515
      %518 = vset.pattern.permute.xlu0 1
      %519 = vperm.xlu0 %518, %v363
      %v520 = vpop.permute.xlu0 %519
      %522 = vset.pattern.permute.xlu0 1
      %523 = vperm.xlu0 %522, %v364
      %v524 = vpop.permute.xlu0 %523
      %526 = vset.pattern.permute.xlu0 1
      %527 = vperm.xlu0 %526, %v365
      %v528 = vpop.permute.xlu0 %527
      %v530 = vlaneseq
      %v531 = vshrl.u32 %v530, 7
      %v532 = vsub.s32 1, %v531
      %v533 = vrot.slane %v349, %v532
      %v534 = vmul.f32 %v468, %v533
      %v535 = vmul.f32 %v472, %v533
      %v536 = vmul.f32 %v476, %v533
      %v537 = vmul.f32 %v480, %v533
      %v538 = vmul.f32 %v484, %v533
      %v539 = vmul.f32 %v488, %v533
      %v540 = vmul.f32 %v492, %v533
      %v541 = vmul.f32 %v496, %v533
      %v542 = vmul.f32 %v500, %v533
      %v543 = vmul.f32 %v504, %v533
      %v544 = vmul.f32 %v508, %v533
      %v545 = vmul.f32 %v512, %v533
      %v546 = vmul.f32 %v516, %v533
      %v547 = vmul.f32 %v520, %v533
      %v548 = vmul.f32 %v524, %v533
      %v549 = vmul.f32 %v528, %v533
      %v550 = vadd.f32 %v450, %v534
      %v551 = vadd.f32 %v451, %v535
      %v552 = vadd.f32 %v452, %v536
      %v553 = vadd.f32 %v453, %v537
      %v554 = vadd.f32 %v454, %v538
      %v555 = vadd.f32 %v455, %v539
      %v556 = vadd.f32 %v456, %v540
      %v557 = vadd.f32 %v457, %v541
      %v558 = vadd.f32 %v458, %v542
      %v559 = vadd.f32 %v459, %v543
      %v560 = vadd.f32 %v460, %v544
      %v561 = vadd.f32 %v461, %v545
      %v562 = vadd.f32 %v462, %v546
      %v563 = vadd.f32 %v463, %v547
      %v564 = vadd.f32 %v464, %v548
      %v565 = vadd.f32 %v465, %v549
      %566 = vset.pattern.permute.xlu0 2
      %567 = vperm.xlu0 %566, %v350
      %v568 = vpop.permute.xlu0 %567
      %570 = vset.pattern.permute.xlu0 2
      %571 = vperm.xlu0 %570, %v351
      %v572 = vpop.permute.xlu0 %571
      %574 = vset.pattern.permute.xlu0 2
      %575 = vperm.xlu0 %574, %v352
      %v576 = vpop.permute.xlu0 %575
      %578 = vset.pattern.permute.xlu0 2
      %579 = vperm.xlu0 %578, %v353
      %v580 = vpop.permute.xlu0 %579
      %582 = vset.pattern.permute.xlu0 2
      %583 = vperm.xlu0 %582, %v354
      %v584 = vpop.permute.xlu0 %583
      %586 = vset.pattern.permute.xlu0 2
      %587 = vperm.xlu0 %586, %v355
      %v588 = vpop.permute.xlu0 %587
      %590 = vset.pattern.permute.xlu0 2
      %591 = vperm.xlu0 %590, %v356
      %v592 = vpop.permute.xlu0 %591
      %594 = vset.pattern.permute.xlu0 2
      %595 = vperm.xlu0 %594, %v357
      %v596 = vpop.permute.xlu0 %595
      %598 = vset.pattern.permute.xlu0 2
      %599 = vperm.xlu0 %598, %v358
      %v600 = vpop.permute.xlu0 %599
      %602 = vset.pattern.permute.xlu0 2
      %603 = vperm.xlu0 %602, %v359
      %v604 = vpop.permute.xlu0 %603
      %606 = vset.pattern.permute.xlu0 2
      %607 = vperm.xlu0 %606, %v360
      %v608 = vpop.permute.xlu0 %607
      %610 = vset.pattern.permute.xlu0 2
      %611 = vperm.xlu0 %610, %v361
      %v612 = vpop.permute.xlu0 %611
      %614 = vset.pattern.permute.xlu0 2
      %615 = vperm.xlu0 %614, %v362
      %v616 = vpop.permute.xlu0 %615
      %618 = vset.pattern.permute.xlu0 2
      %619 = vperm.xlu0 %618, %v363
      %v620 = vpop.permute.xlu0 %619
      %622 = vset.pattern.permute.xlu0 2
      %623 = vperm.xlu0 %622, %v364
      %v624 = vpop.permute.xlu0 %623
      %626 = vset.pattern.permute.xlu0 2
      %627 = vperm.xlu0 %626, %v365
      %v628 = vpop.permute.xlu0 %627
      %v630 = vlaneseq
      %v631 = vshrl.u32 %v630, 7
      %v632 = vsub.s32 2, %v631
      %v633 = vrot.slane %v349, %v632
      %v634 = vmul.f32 %v568, %v633
      %v635 = vmul.f32 %v572, %v633
      %v636 = vmul.f32 %v576, %v633
      %v637 = vmul.f32 %v580, %v633
      %v638 = vmul.f32 %v584, %v633
      %v639 = vmul.f32 %v588, %v633
      %v640 = vmul.f32 %v592, %v633
      %v641 = vmul.f32 %v596, %v633
      %v642 = vmul.f32 %v600, %v633
      %v643 = vmul.f32 %v604, %v633
      %v644 = vmul.f32 %v608, %v633
      %v645 = vmul.f32 %v612, %v633
      %v646 = vmul.f32 %v616, %v633
      %v647 = vmul.f32 %v620, %v633
      %v648 = vmul.f32 %v624, %v633
      %v649 = vmul.f32 %v628, %v633
      %v650 = vadd.f32 %v550, %v634
      %v651 = vadd.f32 %v551, %v635
      %v652 = vadd.f32 %v552, %v636
      %v653 = vadd.f32 %v553, %v637
      %v654 = vadd.f32 %v554, %v638
      %v655 = vadd.f32 %v555, %v639
      %v656 = vadd.f32 %v556, %v640
      %v657 = vadd.f32 %v557, %v641
      %v658 = vadd.f32 %v558, %v642
      %v659 = vadd.f32 %v559, %v643
      %v660 = vadd.f32 %v560, %v644
      %v661 = vadd.f32 %v561, %v645
      %v662 = vadd.f32 %v562, %v646
      %v663 = vadd.f32 %v563, %v647
      %v664 = vadd.f32 %v564, %v648
      %v665 = vadd.f32 %v565, %v649
      %666 = vset.pattern.permute.xlu0 3
      %667 = vperm.xlu0 %666, %v350
      %v668 = vpop.permute.xlu0 %667
      %670 = vset.pattern.permute.xlu0 3
      %671 = vperm.xlu0 %670, %v351
      %v672 = vpop.permute.xlu0 %671
      %674 = vset.pattern.permute.xlu0 3
      %675 = vperm.xlu0 %674, %v352
      %v676 = vpop.permute.xlu0 %675
      %678 = vset.pattern.permute.xlu0 3
      %679 = vperm.xlu0 %678, %v353
      %v680 = vpop.permute.xlu0 %679
      %682 = vset.pattern.permute.xlu0 3
      %683 = vperm.xlu0 %682, %v354
      %v684 = vpop.permute.xlu0 %683
      %686 = vset.pattern.permute.xlu0 3
      %687 = vperm.xlu0 %686, %v355
      %v688 = vpop.permute.xlu0 %687
      %690 = vset.pattern.permute.xlu0 3
      %691 = vperm.xlu0 %690, %v356
      %v692 = vpop.permute.xlu0 %691
      %694 = vset.pattern.permute.xlu0 3
      %695 = vperm.xlu0 %694, %v357
      %v696 = vpop.permute.xlu0 %695
      %698 = vset.pattern.permute.xlu0 3
      %699 = vperm.xlu0 %698, %v358
      %v700 = vpop.permute.xlu0 %699
      %702 = vset.pattern.permute.xlu0 3
      %703 = vperm.xlu0 %702, %v359
      %v704 = vpop.permute.xlu0 %703
      %706 = vset.pattern.permute.xlu0 3
      %707 = vperm.xlu0 %706, %v360
      %v708 = vpop.permute.xlu0 %707
      %710 = vset.pattern.permute.xlu0 3
      %711 = vperm.xlu0 %710, %v361
      %v712 = vpop.permute.xlu0 %711
      %714 = vset.pattern.permute.xlu0 3
      %715 = vperm.xlu0 %714, %v362
      %v716 = vpop.permute.xlu0 %715
      %718 = vset.pattern.permute.xlu0 3
      %719 = vperm.xlu0 %718, %v363
      %v720 = vpop.permute.xlu0 %719
      %722 = vset.pattern.permute.xlu0 3
      %723 = vperm.xlu0 %722, %v364
      %v724 = vpop.permute.xlu0 %723
      %726 = vset.pattern.permute.xlu0 3
      %727 = vperm.xlu0 %726, %v365
      %v728 = vpop.permute.xlu0 %727
      %v730 = vlaneseq
      %v731 = vshrl.u32 %v730, 7
      %v732 = vsub.s32 3, %v731
      %v733 = vrot.slane %v349, %v732
      %v734 = vmul.f32 %v668, %v733
      %v735 = vmul.f32 %v672, %v733
      %v736 = vmul.f32 %v676, %v733
      %v737 = vmul.f32 %v680, %v733
      %v738 = vmul.f32 %v684, %v733
      %v739 = vmul.f32 %v688, %v733
      %v740 = vmul.f32 %v692, %v733
      %v741 = vmul.f32 %v696, %v733
      %v742 = vmul.f32 %v700, %v733
      %v743 = vmul.f32 %v704, %v733
      %v744 = vmul.f32 %v708, %v733
      %v745 = vmul.f32 %v712, %v733
      %v746 = vmul.f32 %v716, %v733
      %v747 = vmul.f32 %v720, %v733
      %v748 = vmul.f32 %v724, %v733
      %v749 = vmul.f32 %v728, %v733
      %v750 = vadd.f32 %v650, %v734
      %v751 = vadd.f32 %v651, %v735
      %v752 = vadd.f32 %v652, %v736
      %v753 = vadd.f32 %v653, %v737
      %v754 = vadd.f32 %v654, %v738
      %v755 = vadd.f32 %v655, %v739
      %v756 = vadd.f32 %v656, %v740
      %v757 = vadd.f32 %v657, %v741
      %v758 = vadd.f32 %v658, %v742
      %v759 = vadd.f32 %v659, %v743
      %v760 = vadd.f32 %v660, %v744
      %v761 = vadd.f32 %v661, %v745
      %v762 = vadd.f32 %v662, %v746
      %v763 = vadd.f32 %v663, %v747
      %v764 = vadd.f32 %v664, %v748
      %v765 = vadd.f32 %v665, %v749
      %v766 = vld [vmem:[%s313] sm:$0xff]
      %v767 = vld [vmem:[%s313 + $0x8] sm:$0xff]
      %v768 = vld [vmem:[%s313 + $0x10] sm:$0xff]
      %v769 = vld [vmem:[%s313 + $0x18] sm:$0xff]
      %v770 = vld [vmem:[%s313 + $0x20] sm:$0xff]
      %v771 = vld [vmem:[%s313 + $0x28] sm:$0xff]
      %v772 = vld [vmem:[%s313 + $0x30] sm:$0xff]
      %v773 = vld [vmem:[%s313 + $0x38] sm:$0xff]
      %v774 = vld [vmem:[%s313 + $0x40] sm:$0xff]
      %v775 = vld [vmem:[%s313 + $0x48] sm:$0xff]
      %v776 = vld [vmem:[%s313 + $0x50] sm:$0xff]
      %v777 = vld [vmem:[%s313 + $0x58] sm:$0xff]
      %v778 = vld [vmem:[%s313 + $0x60] sm:$0xff]
      %v779 = vld [vmem:[%s313 + $0x68] sm:$0xff]
      %v780 = vld [vmem:[%s313 + $0x70] sm:$0xff]
      %v781 = vld [vmem:[%s313 + $0x78] sm:$0xff]
      %783 = vset.pattern.permute.xlu0 0
      %784 = vperm.xlu0 %783, %v766
      %v785 = vpop.permute.xlu0 %784
      %788 = vset.pattern.permute.xlu0 0
      %789 = vperm.xlu0 %788, %v767
      %v790 = vpop.permute.xlu0 %789
      %793 = vset.pattern.permute.xlu0 0
      %794 = vperm.xlu0 %793, %v768
      %v795 = vpop.permute.xlu0 %794
      %798 = vset.pattern.permute.xlu0 0
      %799 = vperm.xlu0 %798, %v769
      %v800 = vpop.permute.xlu0 %799
      %803 = vset.pattern.permute.xlu0 0
      %804 = vperm.xlu0 %803, %v770
      %v805 = vpop.permute.xlu0 %804
      %808 = vset.pattern.permute.xlu0 0
      %809 = vperm.xlu0 %808, %v771
      %v810 = vpop.permute.xlu0 %809
      %813 = vset.pattern.permute.xlu0 0
      %814 = vperm.xlu0 %813, %v772
      %v815 = vpop.permute.xlu0 %814
      %818 = vset.pattern.permute.xlu0 0
      %819 = vperm.xlu0 %818, %v773
      %v820 = vpop.permute.xlu0 %819
      %823 = vset.pattern.permute.xlu0 0
      %824 = vperm.xlu0 %823, %v774
      %v825 = vpop.permute.xlu0 %824
      %828 = vset.pattern.permute.xlu0 0
      %829 = vperm.xlu0 %828, %v775
      %v830 = vpop.permute.xlu0 %829
      %833 = vset.pattern.permute.xlu0 0
      %834 = vperm.xlu0 %833, %v776
      %v835 = vpop.permute.xlu0 %834
      %838 = vset.pattern.permute.xlu0 0
      %839 = vperm.xlu0 %838, %v777
      %v840 = vpop.permute.xlu0 %839
      %843 = vset.pattern.permute.xlu0 0
      %844 = vperm.xlu0 %843, %v778
      %v845 = vpop.permute.xlu0 %844
      %848 = vset.pattern.permute.xlu0 0
      %849 = vperm.xlu0 %848, %v779
      %v850 = vpop.permute.xlu0 %849
      %853 = vset.pattern.permute.xlu0 0
      %854 = vperm.xlu0 %853, %v780
      %v855 = vpop.permute.xlu0 %854
      %858 = vset.pattern.permute.xlu0 0
      %859 = vperm.xlu0 %858, %v781
      %v860 = vpop.permute.xlu0 %859
      %v862 = vadd.f32 %v750, %v785
      %v863 = vadd.f32 %v751, %v790
      %v864 = vadd.f32 %v752, %v795
      %v865 = vadd.f32 %v753, %v800
      %v866 = vadd.f32 %v754, %v805
      %v867 = vadd.f32 %v755, %v810
      %v868 = vadd.f32 %v756, %v815
      %v869 = vadd.f32 %v757, %v820
      %v870 = vadd.f32 %v758, %v825
      %v871 = vadd.f32 %v759, %v830
      %v872 = vadd.f32 %v760, %v835
      %v873 = vadd.f32 %v761, %v840
      %v874 = vadd.f32 %v762, %v845
      %v875 = vadd.f32 %v763, %v850
      %v876 = vadd.f32 %v764, %v855
      %v877 = vadd.f32 %v765, %v860
      %s878 = sld [smem:[#allocation3]]
      %v879 = vmax.f32 %v862, 1e-06
      %v880 = vmax.f32 %v863, 1e-06
      %v881 = vmax.f32 %v864, 1e-06
      %v882 = vmax.f32 %v865, 1e-06
      %v883 = vmax.f32 %v866, 1e-06
      %v884 = vmax.f32 %v867, 1e-06
      %v885 = vmax.f32 %v868, 1e-06
      %v886 = vmax.f32 %v869, 1e-06
      %v887 = vmax.f32 %v870, 1e-06
      %v888 = vmax.f32 %v871, 1e-06
      %v889 = vmax.f32 %v872, 1e-06
      %v890 = vmax.f32 %v873, 1e-06
      %v891 = vmax.f32 %v874, 1e-06
      %v892 = vmax.f32 %v875, 1e-06
      %v893 = vmax.f32 %v876, 1e-06
      %v894 = vmax.f32 %v877, 1e-06
      %v895 = vlog2.pop %v879
      %v896 = vmul.f32 %v895, 0.6931472
      %v897 = vlog2.pop %v880
      %v898 = vmul.f32 %v897, 0.6931472
      %v899 = vlog2.pop %v881
      %v900 = vmul.f32 %v899, 0.6931472
      %v901 = vlog2.pop %v882
      %v902 = vmul.f32 %v901, 0.6931472
      %v903 = vlog2.pop %v883
      %v904 = vmul.f32 %v903, 0.6931472
      %v905 = vlog2.pop %v884
      %v906 = vmul.f32 %v905, 0.6931472
      %v907 = vlog2.pop %v885
      %v908 = vmul.f32 %v907, 0.6931472
      %v909 = vlog2.pop %v886
      %v910 = vmul.f32 %v909, 0.6931472
      %v911 = vlog2.pop %v887
      %v912 = vmul.f32 %v911, 0.6931472
      %v913 = vlog2.pop %v888
      %v914 = vmul.f32 %v913, 0.6931472
      %v915 = vlog2.pop %v889
      %v916 = vmul.f32 %v915, 0.6931472
      %v917 = vlog2.pop %v890
      %v918 = vmul.f32 %v917, 0.6931472
      %v919 = vlog2.pop %v891
      %v920 = vmul.f32 %v919, 0.6931472
      %v921 = vlog2.pop %v892
      %v922 = vmul.f32 %v921, 0.6931472
      %v923 = vlog2.pop %v893
      %v924 = vmul.f32 %v923, 0.6931472
      %v925 = vlog2.pop %v894
      %v926 = vmul.f32 %v925, 0.6931472
      %v927 = vstv %s878
      %v928 = vmul.f32 %v927, %v896
      %v929 = vmul.f32 %v927, %v898
      %v930 = vmul.f32 %v927, %v900
      %v931 = vmul.f32 %v927, %v902
      %v932 = vmul.f32 %v927, %v904
      %v933 = vmul.f32 %v927, %v906
      %v934 = vmul.f32 %v927, %v908
      %v935 = vmul.f32 %v927, %v910
      %v936 = vmul.f32 %v927, %v912
      %v937 = vmul.f32 %v927, %v914
      %v938 = vmul.f32 %v927, %v916
      %v939 = vmul.f32 %v927, %v918
      %v940 = vmul.f32 %v927, %v920
      %v941 = vmul.f32 %v927, %v922
      %v942 = vmul.f32 %v927, %v924
      %v943 = vmul.f32 %v927, %v926
      %v944 = vmul.f32 %v928, 1.442695
      %v945 = vpow.pop %v944
      %v946 = vmul.f32 %v929, 1.442695
      %v947 = vpow.pop %v946
      %v948 = vmul.f32 %v930, 1.442695
      %v949 = vpow.pop %v948
      %v950 = vmul.f32 %v931, 1.442695
      %v951 = vpow.pop %v950
      %v952 = vmul.f32 %v932, 1.442695
      %v953 = vpow.pop %v952
      %v954 = vmul.f32 %v933, 1.442695
      %v955 = vpow.pop %v954
      %v956 = vmul.f32 %v934, 1.442695
      %v957 = vpow.pop %v956
      %v958 = vmul.f32 %v935, 1.442695
      %v959 = vpow.pop %v958
      %v960 = vmul.f32 %v936, 1.442695
      %v961 = vpow.pop %v960
      %v962 = vmul.f32 %v937, 1.442695
      %v963 = vpow.pop %v962
      %v964 = vmul.f32 %v938, 1.442695
      %v965 = vpow.pop %v964
      %v966 = vmul.f32 %v939, 1.442695
      %v967 = vpow.pop %v966
      %v968 = vmul.f32 %v940, 1.442695
      %v969 = vpow.pop %v968
      %v970 = vmul.f32 %v941, 1.442695
      %v971 = vpow.pop %v970
      %v972 = vmul.f32 %v942, 1.442695
      %v973 = vpow.pop %v972
      %v974 = vmul.f32 %v943, 1.442695
      %v975 = vpow.pop %v974
      %v976 = vld [vmem:[#allocation2] sm:$0xff]
      %v977 = vld [vmem:[#allocation2 + $0x8] sm:$0xff]
      %v978 = vld [vmem:[#allocation2 + $0x10] sm:$0xff]
      %v979 = vld [vmem:[#allocation2 + $0x18] sm:$0xff]
      %v980 = vld [vmem:[#allocation2 + $0x20] sm:$0xff]
      %v981 = vld [vmem:[#allocation2 + $0x28] sm:$0xff]
      %v982 = vld [vmem:[#allocation2 + $0x30] sm:$0xff]
      %v983 = vld [vmem:[#allocation2 + $0x38] sm:$0xff]
      %v984 = vld [vmem:[#allocation2 + $0x40] sm:$0xff]
      %v985 = vld [vmem:[#allocation2 + $0x48] sm:$0xff]
      %v986 = vld [vmem:[#allocation2 + $0x50] sm:$0xff]
      %v987 = vld [vmem:[#allocation2 + $0x58] sm:$0xff]
      %v988 = vld [vmem:[#allocation2 + $0x60] sm:$0xff]
      %v989 = vld [vmem:[#allocation2 + $0x68] sm:$0xff]
      %v990 = vld [vmem:[#allocation2 + $0x70] sm:$0xff]
      %v991 = vld [vmem:[#allocation2 + $0x78] sm:$0xff]
      %992 = vadd.xlane.f32.xlu0 %v945
      %v993 = vpop.xlane.xlu0 %992
      %994 = vadd.xlane.f32.xlu0 %v947
      %v995 = vpop.xlane.xlu0 %994
      %996 = vadd.xlane.f32.xlu0 %v949
      %v997 = vpop.xlane.xlu0 %996
      %998 = vadd.xlane.f32.xlu0 %v951
      %v999 = vpop.xlane.xlu0 %998
      %1000 = vadd.xlane.f32.xlu0 %v953
      %v1001 = vpop.xlane.xlu0 %1000
      %1002 = vadd.xlane.f32.xlu0 %v955
      %v1003 = vpop.xlane.xlu0 %1002
      %1004 = vadd.xlane.f32.xlu0 %v957
      %v1005 = vpop.xlane.xlu0 %1004
      %1006 = vadd.xlane.f32.xlu0 %v959
      %v1007 = vpop.xlane.xlu0 %1006
      %1008 = vadd.xlane.f32.xlu0 %v961
      %v1009 = vpop.xlane.xlu0 %1008
      %1010 = vadd.xlane.f32.xlu0 %v963
      %v1011 = vpop.xlane.xlu0 %1010
      %1012 = vadd.xlane.f32.xlu0 %v965
      %v1013 = vpop.xlane.xlu0 %1012
      %1014 = vadd.xlane.f32.xlu0 %v967
      %v1015 = vpop.xlane.xlu0 %1014
      %1016 = vadd.xlane.f32.xlu0 %v969
      %v1017 = vpop.xlane.xlu0 %1016
      %1018 = vadd.xlane.f32.xlu0 %v971
      %v1019 = vpop.xlane.xlu0 %1018
      %1020 = vadd.xlane.f32.xlu0 %v973
      %v1021 = vpop.xlane.xlu0 %1020
      %1022 = vadd.xlane.f32.xlu0 %v975
      %v1023 = vpop.xlane.xlu0 %1022
      %v1024 = vadd.f32 %v976, %v993
      %v1025 = vadd.f32 %v977, %v995
      %v1026 = vadd.f32 %v978, %v997
      %v1027 = vadd.f32 %v979, %v999
      %v1028 = vadd.f32 %v980, %v1001
      %v1029 = vadd.f32 %v981, %v1003
      %v1030 = vadd.f32 %v982, %v1005
      %v1031 = vadd.f32 %v983, %v1007
      %v1032 = vadd.f32 %v984, %v1009
      %v1033 = vadd.f32 %v985, %v1011
      %v1034 = vadd.f32 %v986, %v1013
      %v1035 = vadd.f32 %v987, %v1015
      %v1036 = vadd.f32 %v988, %v1017
      %v1037 = vadd.f32 %v989, %v1019
      %v1038 = vadd.f32 %v990, %v1021
      %v1039 = vadd.f32 %v991, %v1023
      %vm1040 = vcmask 7168
      %1041 = vst.msk [vmem:[#allocation2] sm:$0xff] %vm1040, %v1024
      %1042 = vst.msk [vmem:[#allocation2 + $0x8] sm:$0xff] %vm1040, %v1025
      %1043 = vst.msk [vmem:[#allocation2 + $0x10] sm:$0xff] %vm1040, %v1026
      %1044 = vst.msk [vmem:[#allocation2 + $0x18] sm:$0xff] %vm1040, %v1027
      %1045 = vst.msk [vmem:[#allocation2 + $0x20] sm:$0xff] %vm1040, %v1028
      %1046 = vst.msk [vmem:[#allocation2 + $0x28] sm:$0xff] %vm1040, %v1029
      %1047 = vst.msk [vmem:[#allocation2 + $0x30] sm:$0xff] %vm1040, %v1030
      %1048 = vst.msk [vmem:[#allocation2 + $0x38] sm:$0xff] %vm1040, %v1031
      %1049 = vst.msk [vmem:[#allocation2 + $0x40] sm:$0xff] %vm1040, %v1032
      %1050 = vst.msk [vmem:[#allocation2 + $0x48] sm:$0xff] %vm1040, %v1033
      %1051 = vst.msk [vmem:[#allocation2 + $0x50] sm:$0xff] %vm1040, %v1034
      %1052 = vst.msk [vmem:[#allocation2 + $0x58] sm:$0xff] %vm1040, %v1035
      %1053 = vst.msk [vmem:[#allocation2 + $0x60] sm:$0xff] %vm1040, %v1036
      %1054 = vst.msk [vmem:[#allocation2 + $0x68] sm:$0xff] %vm1040, %v1037
      %1055 = vst.msk [vmem:[#allocation2 + $0x70] sm:$0xff] %vm1040, %v1038
      %1056 = vst.msk [vmem:[#allocation2 + $0x78] sm:$0xff] %vm1040, %v1039
      %p1057 = scmp.eq.s32.totalorder %s24, 1
      // Predicated region
      $region45: #{tpu_custom_call.1} parent=39 // pred_check
        %p1058 = pneg %p1057
      $region46: #{tpu_custom_call.1} parent=39 // pred_check_branch
        %1060 = sbr.rel (%p1058) target = $region48
      $region47: #{tpu_custom_call.1} parent=39 // pred_region
        %v1061 = vld [vmem:[#allocation2] sm:$0xff]
        %v1062 = vld [vmem:[#allocation2 + $0x8] sm:$0xff]
        %v1063 = vld [vmem:[#allocation2 + $0x10] sm:$0xff]
        %v1064 = vld [vmem:[#allocation2 + $0x18] sm:$0xff]
        %v1065 = vld [vmem:[#allocation2 + $0x20] sm:$0xff]
        %v1066 = vld [vmem:[#allocation2 + $0x28] sm:$0xff]
        %v1067 = vld [vmem:[#allocation2 + $0x30] sm:$0xff]
        %v1068 = vld [vmem:[#allocation2 + $0x38] sm:$0xff]
        %v1069 = vld [vmem:[#allocation2 + $0x40] sm:$0xff]
        %v1070 = vld [vmem:[#allocation2 + $0x48] sm:$0xff]
        %v1071 = vld [vmem:[#allocation2 + $0x50] sm:$0xff]
        %v1072 = vld [vmem:[#allocation2 + $0x58] sm:$0xff]
        %v1073 = vld [vmem:[#allocation2 + $0x60] sm:$0xff]
        %v1074 = vld [vmem:[#allocation2 + $0x68] sm:$0xff]
        %v1075 = vld [vmem:[#allocation2 + $0x70] sm:$0xff]
        %v1076 = vld [vmem:[#allocation2 + $0x78] sm:$0xff]
        %v1077 = vmul.f32 %v1061, 0.00390625
        %v1078 = vmul.f32 %v1062, 0.00390625
        %v1079 = vmul.f32 %v1063, 0.00390625
        %v1080 = vmul.f32 %v1064, 0.00390625
        %v1081 = vmul.f32 %v1065, 0.00390625
        %v1082 = vmul.f32 %v1066, 0.00390625
        %v1083 = vmul.f32 %v1067, 0.00390625
        %v1084 = vmul.f32 %v1068, 0.00390625
        %v1085 = vmul.f32 %v1069, 0.00390625
        %v1086 = vmul.f32 %v1070, 0.00390625
        %v1087 = vmul.f32 %v1071, 0.00390625
        %v1088 = vmul.f32 %v1072, 0.00390625
        %v1089 = vmul.f32 %v1073, 0.00390625
        %v1090 = vmul.f32 %v1074, 0.00390625
        %v1091 = vmul.f32 %v1075, 0.00390625
        %v1092 = vmul.f32 %v1076, 0.00390625
        %v1093 = vlog2.pop %v1077
        %v1094 = vmul.f32 %v1093, 0.6931472
        %v1095 = vlog2.pop %v1078
        %v1096 = vmul.f32 %v1095, 0.6931472
        %v1097 = vlog2.pop %v1079
        %v1098 = vmul.f32 %v1097, 0.6931472
        %v1099 = vlog2.pop %v1080
        %v1100 = vmul.f32 %v1099, 0.6931472
        %v1101 = vlog2.pop %v1081
        %v1102 = vmul.f32 %v1101, 0.6931472
        %v1103 = vlog2.pop %v1082
        %v1104 = vmul.f32 %v1103, 0.6931472
        %v1105 = vlog2.pop %v1083
        %v1106 = vmul.f32 %v1105, 0.6931472
        %v1107 = vlog2.pop %v1084
        %v1108 = vmul.f32 %v1107, 0.6931472
        %v1109 = vlog2.pop %v1085
        %v1110 = vmul.f32 %v1109, 0.6931472
        %v1111 = vlog2.pop %v1086
        %v1112 = vmul.f32 %v1111, 0.6931472
        %v1113 = vlog2.pop %v1087
        %v1114 = vmul.f32 %v1113, 0.6931472
        %v1115 = vlog2.pop %v1088
        %v1116 = vmul.f32 %v1115, 0.6931472
        %v1117 = vlog2.pop %v1089
        %v1118 = vmul.f32 %v1117, 0.6931472
        %v1119 = vlog2.pop %v1090
        %v1120 = vmul.f32 %v1119, 0.6931472
        %v1121 = vlog2.pop %v1091
        %v1122 = vmul.f32 %v1121, 0.6931472
        %v1123 = vlog2.pop %v1092
        %v1124 = vmul.f32 %v1123, 0.6931472
        %v1125 = vrcp.pop %v927
        %v1126 = vmul.f32 %v1094, %v1125
        %v1127 = vmul.f32 %v1096, %v1125
        %v1128 = vmul.f32 %v1098, %v1125
        %v1129 = vmul.f32 %v1100, %v1125
        %v1130 = vmul.f32 %v1102, %v1125
        %v1131 = vmul.f32 %v1104, %v1125
        %v1132 = vmul.f32 %v1106, %v1125
        %v1133 = vmul.f32 %v1108, %v1125
        %v1134 = vmul.f32 %v1110, %v1125
        %v1135 = vmul.f32 %v1112, %v1125
        %v1136 = vmul.f32 %v1114, %v1125
        %v1137 = vmul.f32 %v1116, %v1125
        %v1138 = vmul.f32 %v1118, %v1125
        %v1139 = vmul.f32 %v1120, %v1125
        %v1140 = vmul.f32 %v1122, %v1125
        %v1141 = vmul.f32 %v1124, %v1125
        %v1142 = vmul.f32 %v1126, 1.442695
        %v1143 = vpow.pop %v1142
        %v1144 = vmul.f32 %v1127, 1.442695
        %v1145 = vpow.pop %v1144
        %v1146 = vmul.f32 %v1128, 1.442695
        %v1147 = vpow.pop %v1146
        %v1148 = vmul.f32 %v1129, 1.442695
        %v1149 = vpow.pop %v1148
        %v1150 = vmul.f32 %v1130, 1.442695
        %v1151 = vpow.pop %v1150
        %v1152 = vmul.f32 %v1131, 1.442695
        %v1153 = vpow.pop %v1152
        %v1154 = vmul.f32 %v1132, 1.442695
        %v1155 = vpow.pop %v1154
        %v1156 = vmul.f32 %v1133, 1.442695
        %v1157 = vpow.pop %v1156
        %v1158 = vmul.f32 %v1134, 1.442695
        %v1159 = vpow.pop %v1158
        %v1160 = vmul.f32 %v1135, 1.442695
        %v1161 = vpow.pop %v1160
        %v1162 = vmul.f32 %v1136, 1.442695
        %v1163 = vpow.pop %v1162
        %v1164 = vmul.f32 %v1137, 1.442695
        %v1165 = vpow.pop %v1164
        %v1166 = vmul.f32 %v1138, 1.442695
        %v1167 = vpow.pop %v1166
        %v1168 = vmul.f32 %v1139, 1.442695
        %v1169 = vpow.pop %v1168
        %v1170 = vmul.f32 %v1140, 1.442695
        %v1171 = vpow.pop %v1170
        %v1172 = vmul.f32 %v1141, 1.442695
        %v1173 = vpow.pop %v1172
        %v1174 = vld [vmem:[%s319] sm:$0xff]
        %v1175 = vld [vmem:[%s319 + $0x8] sm:$0xff]
        %v1176 = vld [vmem:[%s319 + $0x10] sm:$0xff]
        %v1177 = vld [vmem:[%s319 + $0x18] sm:$0xff]
        %v1178 = vld [vmem:[%s319 + $0x20] sm:$0xff]
        %v1179 = vld [vmem:[%s319 + $0x28] sm:$0xff]
        %v1180 = vld [vmem:[%s319 + $0x30] sm:$0xff]
        %v1181 = vld [vmem:[%s319 + $0x38] sm:$0xff]
        %v1182 = vld [vmem:[%s319 + $0x40] sm:$0xff]
        %v1183 = vld [vmem:[%s319 + $0x48] sm:$0xff]
        %v1184 = vld [vmem:[%s319 + $0x50] sm:$0xff]
        %v1185 = vld [vmem:[%s319 + $0x58] sm:$0xff]
        %v1186 = vld [vmem:[%s319 + $0x60] sm:$0xff]
        %v1187 = vld [vmem:[%s319 + $0x68] sm:$0xff]
        %v1188 = vld [vmem:[%s319 + $0x70] sm:$0xff]
        %v1189 = vld [vmem:[%s319 + $0x78] sm:$0xff]
        %v1190 = vmul.f32 %v1143, %v1174
        %v1191 = vmul.f32 %v1145, %v1175
        %v1192 = vmul.f32 %v1147, %v1176
        %v1193 = vmul.f32 %v1149, %v1177
        %v1194 = vmul.f32 %v1151, %v1178
        %v1195 = vmul.f32 %v1153, %v1179
        %v1196 = vmul.f32 %v1155, %v1180
        %v1197 = vmul.f32 %v1157, %v1181
        %v1198 = vmul.f32 %v1159, %v1182
        %v1199 = vmul.f32 %v1161, %v1183
        %v1200 = vmul.f32 %v1163, %v1184
        %v1201 = vmul.f32 %v1165, %v1185
        %v1202 = vmul.f32 %v1167, %v1186
        %v1203 = vmul.f32 %v1169, %v1187
        %v1204 = vmul.f32 %v1171, %v1188
        %v1205 = vmul.f32 %v1173, %v1189
        %v1206 = vsel %vm1040, %v1190, 0.0
        %v1207 = vsel %vm1040, %v1191, 0.0
        %v1208 = vadd.f32 %v1206, %v1207
        %v1209 = vsel %vm1040, %v1192, 0.0
        %v1210 = vadd.f32 %v1208, %v1209
        %v1211 = vsel %vm1040, %v1193, 0.0
        %v1212 = vadd.f32 %v1210, %v1211
        %v1213 = vsel %vm1040, %v1194, 0.0
        %v1214 = vadd.f32 %v1212, %v1213
        %v1215 = vsel %vm1040, %v1195, 0.0
        %v1216 = vadd.f32 %v1214, %v1215
        %v1217 = vsel %vm1040, %v1196, 0.0
        %v1218 = vadd.f32 %v1216, %v1217
        %v1219 = vsel %vm1040, %v1197, 0.0
        %v1220 = vadd.f32 %v1218, %v1219
        %v1221 = vsel %vm1040, %v1198, 0.0
        %v1222 = vadd.f32 %v1220, %v1221
        %v1223 = vsel %vm1040, %v1199, 0.0
        %v1224 = vadd.f32 %v1222, %v1223
        %v1225 = vsel %vm1040, %v1200, 0.0
        %v1226 = vadd.f32 %v1224, %v1225
        %v1227 = vsel %vm1040, %v1201, 0.0
        %v1228 = vadd.f32 %v1226, %v1227
        %v1229 = vsel %vm1040, %v1202, 0.0
        %v1230 = vadd.f32 %v1228, %v1229
        %v1231 = vsel %vm1040, %v1203, 0.0
        %v1232 = vadd.f32 %v1230, %v1231
        %v1233 = vsel %vm1040, %v1204, 0.0
        %v1234 = vadd.f32 %v1232, %v1233
        %v1235 = vsel %vm1040, %v1205, 0.0
        %v1236 = vadd.f32 %v1234, %v1235
        %v1237 = vrot.slane %v1236, 4
        %v1238 = vadd.f32 %v1236, %v1237
        %v1239 = vrot.slane %v1238, 2
        %v1240 = vadd.f32 %v1238, %v1239
        %v1241 = vrot.slane %v1240, 1
        %v1242 = vadd.f32 %v1240, %v1241
        %vm1243 = vcmask 0
        %1244 = vst.msk [vmem:[%s327] sm:$0x1] %vm1243, %v1242
      $region48: #{tpu_custom_call.1} parent=39 // pred_fallthru
        _
      %p1245 = scmp.lt.s32.totalorder %s22, 1
      %s1246 = scalar_select %p1245, %s22, 1
      %p1247 = scmp.lt.s32.totalorder %s23, 1
      %s1248 = scalar_select %p1247, %s23, 1
      %s1249 = smul.addr %s1246, 2
      %s1250 = sadd.s32 %s1248, %s1249
      %s1251 = scalar_lea.vmem %s5, %s1250
      // Predicated region
      $region49: #{tpu_custom_call.1} parent=39 // pred_check
        %p1252 = pneg %p183
      $region50: #{tpu_custom_call.1} parent=39 // pred_check_branch
        %1254 = sbr.rel (%p1252) target = $region52
      $region51: #{tpu_custom_call.1} parent=39 // pred_region
        _
      $region52: #{tpu_custom_call.1} parent=39 // pred_fallthru
        _
    $region40: #{tpu_custom_call.1} parent=5 // pred_fallthru
      _
    %p1255 = scmp.le.s32.totalorder 2, %s12
    // Predicated region
    $region53: #{tpu_custom_call.1} parent=5 // pred_check
      %p1256 = pneg %p1255
    $region54: #{tpu_custom_call.1} parent=5 // pred_check_branch
      %1258 = sbr.rel (%p1256) target = $region56
    $region55: #{tpu_custom_call.1} parent=5 // pred_region
      %s1259 = ssub.s32 %s12, 2
      // Predicated region
      $region57: #{tpu_custom_call.1} parent=55 // pred_check
        %p1260 = pneg %p189
      $region58: #{tpu_custom_call.1} parent=55 // pred_check_branch
        %1262 = sbr.rel (%p1260) target = $region60
      $region59: #{tpu_custom_call.1} parent=55 // pred_region
        %p1263 = scmp.lt.s32.totalorder %s25, 1
        %s1264 = scalar_select %p1263, %s25, 1
        %p1265 = scmp.lt.s32.totalorder %s26, 1
        %s1266 = scalar_select %p1265, %s26, 1
        %s1267 = smul.addr %s1264, 2
        %s1268 = sadd.s32 %s1266, %s1267
        %s1269 = scalar_lea.vmem %s5, %s1268
      $region60: #{tpu_custom_call.1} parent=55 // pred_fallthru
        _
    $region56: #{tpu_custom_call.1} parent=5 // pred_fallthru
      _
  $region6: #{tpu_custom_call.1} parent=0 // loop_footer
    %s16 = sadd.s32 1, %s12
  $region7: #{tpu_custom_call.1} parent=0 // loop_footer_branch
    %11 = sbr.rel target = $region3
  $region8: #{tpu_custom_call.1} parent=0 // loop_exit
    _

</llo_original>
